<compile_context>
chip_gen: v6e
topology: v6e:2x2x1
jax: 0.10.0
libtpu: 0.0.40
codegen_flags: <defaults>
</compile_context>

<pallas_src>
import jax
import jax.numpy as jnp
from jax.experimental import pallas as pl
from jax.experimental.pallas import tpu as pltpu


_SMOOTH = 1e-05
_LANE = 128
_MAX_TILE_F = 8192                       # cap on feature-tile width (lanes)
_INPUT_VMEM_BUDGET = 16 * 1024 * 1024    # budget for 2 inputs x 2 pipeline buffers
_VMEM_LIMIT_BYTES = 48 * 1024 * 1024     # scoped VMEM limit (under v7x 64 MiB physical)


def _dice_partial_kernel(x_ref, t_ref, inter_ref, total_ref, inter_sc, total_sc):
    j = pl.program_id(1)  # feature-tile (reduction) axis

    # init per-row accumulators on the first feature tile of this split
    @pl.when(j == 0)
    def _():
        inter_sc[...] = jnp.zeros_like(inter_sc)
        total_sc[...] = jnp.zeros_like(total_sc)

    x = x_ref[...].astype(jnp.float32)
    t = t_ref[...].astype(jnp.float32)

    inter_sc[...] += jnp.sum(x * t, axis=1, keepdims=True)
    # sum(x) + sum(t) fused into a single cross-lane reduction
    total_sc[...] += jnp.sum(x + t, axis=1, keepdims=True)

    # write this split's per-row partials on the last feature tile
    @pl.when(j == pl.num_programs(1) - 1)
    def _():
        inter_ref[0] = inter_sc[...]
        total_ref[0] = total_sc[...]


def dice_loss(inp, target):
    """inp, target: NCHW (or any shape with a leading batch dim). Returns scalar."""
    num = inp.shape[0]
    x = inp.reshape(num, -1)
    t = target.reshape(num, -1)

    # stream native dtypes; bools go through int8 (same byte traffic, clean layout)
    if x.dtype == jnp.bool_:
        x = x.astype(jnp.int8)
    if t.dtype == jnp.bool_:
        t = t.astype(jnp.int8)
    F = x.shape[1]

    # --- feature tile sized from the double-buffered input VMEM budget ---
    itemsize = max(x.dtype.itemsize, t.dtype.itemsize)
    num_pad = ((num + 7) // 8) * 8                       # sublane-padded rows in VMEM
    cap = _INPUT_VMEM_BUDGET // (4 * num_pad * itemsize)  # 2 inputs x 2 buffers
    cap = max(_LANE, (cap // _LANE) * _LANE)
    cap = min(cap, _MAX_TILE_F)

    if F <= cap:
        tile_f, num_splits, f_pad = F, 1, F              # single full-width tile
    else:
        tile_f = cap                                     # lane-aligned large tile
        num_splits = 2                                   # feeds both TCs on v7x
        chunk = tile_f * num_splits
        f_pad = ((F + chunk - 1) // chunk) * chunk       # pad instead of giant fallback tile

    if f_pad != F:
        x = jnp.pad(x, ((0, 0), (0, f_pad - F)))         # zeros don't change any sum
        t = jnp.pad(t, ((0, 0), (0, f_pad - F)))

    tiles_per_split = (f_pad // tile_f) // num_splits

    inter_parts, total_parts = pl.pallas_call(
        _dice_partial_kernel,
        out_shape=(
            jax.ShapeDtypeStruct((num_splits, num, 1), jnp.float32),  # sum(x*t) per row
            jax.ShapeDtypeStruct((num_splits, num, 1), jnp.float32),  # sum(x)+sum(t) per row
        ),
        grid_spec=pltpu.PrefetchScalarGridSpec(
            num_scalar_prefetch=0,
            grid=(num_splits, tiles_per_split),
            in_specs=[
                pl.BlockSpec((num, tile_f), lambda s, j: (0, s * tiles_per_split + j)),
                pl.BlockSpec((num, tile_f), lambda s, j: (0, s * tiles_per_split + j)),
            ],
            out_specs=(
                pl.BlockSpec((1, num, 1), lambda s, j: (s, 0, 0)),
                pl.BlockSpec((1, num, 1), lambda s, j: (s, 0, 0)),
            ),
            scratch_shapes=[
                pltpu.VMEM((num, 1), jnp.float32),  # sum(x*t) per row
                pltpu.VMEM((num, 1), jnp.float32),  # sum(x)+sum(t) per row
            ],
        ),
        compiler_params=pltpu.CompilerParams(
            dimension_semantics=("parallel", "arbitrary"),
            vmem_limit_bytes=_VMEM_LIMIT_BYTES,
        ),
    )(x, t)

    # tiny epilogue in plain JAX: combine splits, apply smooth / mean / (1 - mean)
    inter = jnp.sum(inter_parts[:, :, 0], axis=0)
    total = jnp.sum(total_parts[:, :, 0], axis=0)
    dice = (2.0 * inter + _SMOOTH) / (total + _SMOOTH)
    return 1.0 - jnp.sum(dice) / num


def dice_loss_ref(inp, target):
    smooth = 1e-05
    num = inp.shape[0]
    x = inp.reshape(num, -1).astype(jnp.float32)
    t = target.reshape(num, -1).astype(jnp.float32)
    inter = (x * t).sum(axis=1)
    dice = (2.0 * inter + smooth) / (x.sum(axis=1) + t.sum(axis=1) + smooth)
    return 1.0 - dice.sum() / num


if __name__ == "__main__":
    key = jax.random.PRNGKey(0)
    k1, k2, k3, k4 = jax.random.split(key, 4)

    # Case 1: NCHW batch=2, channels=4, spatial=16x16 -> F=1024 (single full tile)
    x1 = jax.nn.sigmoid(jax.random.normal(k1, (2, 4, 16, 16), dtype=jnp.float32))
    y1 = (jax.random.uniform(k2, (2, 4, 16, 16)) > 0.5).astype(jnp.float32)
    out1 = jax.block_until_ready(dice_loss(x1, y1))
    ref1 = jax.block_until_ready(dice_loss_ref(x1, y1))
    assert jnp.allclose(out1, ref1, rtol=1e-5, atol=1e-6), (out1, ref1)

    # Case 2: F=32768 > tile cap -> 2 parallel splits x 2 feature tiles each
    x2 = jax.nn.sigmoid(jax.random.normal(k3, (2, 8, 64, 64), dtype=jnp.float32))
    y2 = (jax.random.uniform(k4, (2, 8, 64, 64)) > 0.5).astype(jnp.float32)
    out2 = jax.block_until_ready(dice_loss(x2, y2))
    ref2 = jax.block_until_ready(dice_loss_ref(x2, y2))
    assert jnp.allclose(out2, ref2, rtol=1e-5, atol=1e-6), (out2, ref2)

    print("KERNEL_OK")
</pallas_src>

<mosaic_0001>
module attributes {stable_mosaic.version = 11 : i64} {
  func.func @_dice_partial_kernel(%arg0: i32, %arg1: i32, %arg2: memref<2x1024xf32, #tpu.memory_space<vmem>>, %arg3: memref<2x1024xf32, #tpu.memory_space<vmem>>, %arg4: memref<1x2x1xf32, #tpu.memory_space<vmem>>, %arg5: memref<1x2x1xf32, #tpu.memory_space<vmem>>, %arg6: memref<2x1xf32, #tpu.memory_space<vmem>>, %arg7: memref<2x1xf32, #tpu.memory_space<vmem>>) attributes {dimension_semantics = [#tpu.dimension_semantics<parallel>, #tpu.dimension_semantics<arbitrary>], iteration_bounds = array<i64: 1, 1>, scalar_prefetch = 0 : i64, scratch_operands = 2 : i64, tpu.core_type = #tpu.core_type<tc>, window_params = [{transform_indices = @transform_0, window_bounds = array<i64: 2, 1024>}, {transform_indices = @transform_1, window_bounds = array<i64: 2, 1024>}, {transform_indices = @transform_2, window_bounds = array<i64: 1, 2, 1>}, {transform_indices = @transform_3, window_bounds = array<i64: 1, 2, 1>}]} {
    %c0_i32 = arith.constant 0 : i32
    %0 = arith.cmpi eq, %arg1, %c0_i32 : i32
    %1 = arith.extui %0 : i1 to i32
    %c0_i32_0 = arith.constant 0 : i32
    %2 = arith.cmpi ne, %1, %c0_i32_0 : i32
    scf.if %2 {
      %cst_15 = arith.constant 0.000000e+00 : f32
      %20 = vector.broadcast %cst_15 : f32 to vector<2x1xf32>
      %c0_16 = arith.constant 0 : index
      %c0_17 = arith.constant 0 : index
      %21 = vector.load %arg6[%c0_16, %c0_17] : memref<2x1xf32, #tpu.memory_space<vmem>>, vector<2x1xf32>
      tpu.vector_store %arg6[%c0_16, %c0_17], %20 {strides = array<i32>} : memref<2x1xf32, #tpu.memory_space<vmem>>, vector<2x1xf32>,
      %cst_18 = arith.constant 0.000000e+00 : f32
      %22 = vector.broadcast %cst_18 : f32 to vector<2x1xf32>
      %c0_19 = arith.constant 0 : index
      %c0_20 = arith.constant 0 : index
      %23 = vector.load %arg7[%c0_19, %c0_20] : memref<2x1xf32, #tpu.memory_space<vmem>>, vector<2x1xf32>
      tpu.vector_store %arg7[%c0_19, %c0_20], %22 {strides = array<i32>} : memref<2x1xf32, #tpu.memory_space<vmem>>, vector<2x1xf32>,
    } else {
    }
    %c0 = arith.constant 0 : index
    %c0_1 = arith.constant 0 : index
    %3 = vector.load %arg2[%c0, %c0_1] : memref<2x1024xf32, #tpu.memory_space<vmem>>, vector<2x1024xf32>
    %c0_2 = arith.constant 0 : index
    %c0_3 = arith.constant 0 : index
    %4 = vector.load %arg3[%c0_2, %c0_3] : memref<2x1024xf32, #tpu.memory_space<vmem>>, vector<2x1024xf32>
    %c0_4 = arith.constant 0 : index
    %c0_5 = arith.constant 0 : index
    %5 = vector.load %arg6[%c0_4, %c0_5] : memref<2x1xf32, #tpu.memory_space<vmem>>, vector<2x1xf32>
    %6 = arith.mulf %3, %4 : vector<2x1024xf32>
    %cst = arith.constant dense<0.000000e+00> : vector<2xf32>
    %7 = vector.multi_reduction <add>, %6, %cst [1] : vector<2x1024xf32> to vector<2xf32>
    %8 = vector.shape_cast %7 : vector<2xf32> to vector<2x1xf32>
    %9 = arith.addf %5, %8 : vector<2x1xf32>
    %c0_6 = arith.constant 0 : index
    %c0_7 = arith.constant 0 : index
    %10 = vector.load %arg6[%c0_6, %c0_7] : memref<2x1xf32, #tpu.memory_space<vmem>>, vector<2x1xf32>
    tpu.vector_store %arg6[%c0_6, %c0_7], %9 {strides = array<i32>} : memref<2x1xf32, #tpu.memory_space<vmem>>, vector<2x1xf32>,
    %c0_8 = arith.constant 0 : index
    %c0_9 = arith.constant 0 : index
    %11 = vector.load %arg7[%c0_8, %c0_9] : memref<2x1xf32, #tpu.memory_space<vmem>>, vector<2x1xf32>
    %12 = arith.addf %3, %4 : vector<2x1024xf32>
    %cst_10 = arith.constant dense<0.000000e+00> : vector<2xf32>
    %13 = vector.multi_reduction <add>, %12, %cst_10 [1] : vector<2x1024xf32> to vector<2xf32>
    %14 = vector.shape_cast %13 : vector<2xf32> to vector<2x1xf32>
    %15 = arith.addf %11, %14 : vector<2x1xf32>
    %c0_11 = arith.constant 0 : index
    %c0_12 = arith.constant 0 : index
    %16 = vector.load %arg7[%c0_11, %c0_12] : memref<2x1xf32, #tpu.memory_space<vmem>>, vector<2x1xf32>
    tpu.vector_store %arg7[%c0_11, %c0_12], %15 {strides = array<i32>} : memref<2x1xf32, #tpu.memory_space<vmem>>, vector<2x1xf32>,
    %c0_i32_13 = arith.constant 0 : i32
    %17 = arith.cmpi eq, %arg1, %c0_i32_13 : i32
    %18 = arith.extui %17 : i1 to i32
    %c0_i32_14 = arith.constant 0 : i32
    %19 = arith.cmpi ne, %18, %c0_i32_14 : i32
    scf.if %19 {
      %c0_15 = arith.constant 0 : index
      %c0_16 = arith.constant 0 : index
      %20 = vector.load %arg6[%c0_15, %c0_16] : memref<2x1xf32, #tpu.memory_space<vmem>>, vector<2x1xf32>
      %c0_17 = arith.constant 0 : index
      %c0_18 = arith.constant 0 : index
      %c0_19 = arith.constant 0 : index
      %21 = vector.load %arg4[%c0_17, %c0_18, %c0_19] : memref<1x2x1xf32, #tpu.memory_space<vmem>>, vector<1x2x1xf32>
      %22 = vector.shape_cast %21 : vector<1x2x1xf32> to vector<2x1xf32>
      %23 = vector.shape_cast %20 : vector<2x1xf32> to vector<1x2x1xf32>
      tpu.vector_store %arg4[%c0_17, %c0_18, %c0_19], %23 {strides = array<i32>} : memref<1x2x1xf32, #tpu.memory_space<vmem>>, vector<1x2x1xf32>,
      %c0_20 = arith.constant 0 : index
      %c0_21 = arith.constant 0 : index
      %24 = vector.load %arg7[%c0_20, %c0_21] : memref<2x1xf32, #tpu.memory_space<vmem>>, vector<2x1xf32>
      %c0_22 = arith.constant 0 : index
      %c0_23 = arith.constant 0 : index
      %c0_24 = arith.constant 0 : index
      %25 = vector.load %arg5[%c0_22, %c0_23, %c0_24] : memref<1x2x1xf32, #tpu.memory_space<vmem>>, vector<1x2x1xf32>
      %26 = vector.shape_cast %25 : vector<1x2x1xf32> to vector<2x1xf32>
      %27 = vector.shape_cast %24 : vector<2x1xf32> to vector<1x2x1xf32>
      tpu.vector_store %arg5[%c0_22, %c0_23, %c0_24], %27 {strides = array<i32>} : memref<1x2x1xf32, #tpu.memory_space<vmem>>, vector<1x2x1xf32>,
    } else {
    }
    return
  }
  func.func @transform_0(%arg0: i32, %arg1: i32) -> (i32, i32) {
    %c1_i32 = arith.constant 1 : i32
    %0 = arith.muli %arg0, %c1_i32 : i32
    %1 = arith.addi %0, %arg1 : i32
    %c0_i32 = arith.constant 0 : i32
    %c0_i32_0 = arith.constant 0 : i32
    return %c0_i32, %1 : i32, i32
  }
  func.func @transform_1(%arg0: i32, %arg1: i32) -> (i32, i32) {
    %c1_i32 = arith.constant 1 : i32
    %0 = arith.muli %arg0, %c1_i32 : i32
    %1 = arith.addi %0, %arg1 : i32
    %c0_i32 = arith.constant 0 : i32
    %c0_i32_0 = arith.constant 0 : i32
    return %c0_i32, %1 : i32, i32
  }
  func.func @transform_2(%arg0: i32, %arg1: i32) -> (i32, i32, i32) {
    %c0_i32 = arith.constant 0 : i32
    %c0_i32_0 = arith.constant 0 : i32
    %c0_i32_1 = arith.constant 0 : i32
    return %arg0, %c0_i32, %c0_i32_0 : i32, i32, i32
  }
  func.func @transform_3(%arg0: i32, %arg1: i32) -> (i32, i32, i32) {
    %c0_i32 = arith.constant 0 : i32
    %c0_i32_0 = arith.constant 0 : i32
    %c0_i32_1 = arith.constant 0 : i32
    return %arg0, %c0_i32, %c0_i32_0 : i32, i32, i32
  }
}

</mosaic_0001>

<llo_original>
// kernel: tpu_custom_call.1
$region0: #{tpu_custom_call.1}
  #allocation0 [shape = 'u32[]', space=smem, size = 0x4, offset = 0x4, fixed_abs, tag = 'smem constant byte address 0x4 - core index']
  #allocation1 [shape = 'u32[144,128]{1,0:T(1,128)}', space=vmem, size = 0x12000, scoped, tag = 'internal scratch']
  #allocation2 [shape = 'f32[2,1]{1,0:T(2,128)}', space=vmem, size = 0x400, scoped, tag = 'scratch operand']
  #allocation3 [shape = 'f32[2,1]{1,0:T(2,128)}', space=vmem, size = 0x400, scoped, tag = 'scratch operand']
  %s0 = inlined_call_operand.hbm [shape: f32[2,1024], index: 0, kind: input, shape index: {}]
  %s1 = inlined_call_operand.hbm [shape: f32[2,1024], index: 1, kind: input, shape index: {}]
  %s2 = inlined_call_operand.vmem [shape: f32[1,2,1], index: 2, kind: output, shape index: {0}]
  %s3 = inlined_call_operand.vmem [shape: f32[1,2,1], index: 3, kind: output, shape index: {1}]
  %4 = xla_tuple %s2, %s3
  %s5 = sld [smem:[#allocation0]]
  $region42: #{tpu_custom_call.1} parent=0
    _
  %s7 = ssub.s32 1, %s5
  %s8 = scalar_select 0, %s7, %s5
  $region1: #{tpu_custom_call.1} parent=0
    #allocation4 [shape = 'u8[8192]{0}', space=vmem, size = 0x2000, scoped, tag = 'input window, operand 0, single buffered']
    #allocation5 [shape = 's32[1]{0}', space=sflag, size = 0x4, scoped, tag = 'scoped memory for tpu_custom_call.1']
    #allocation6 [shape = 'u8[8192]{0}', space=vmem, size = 0x2000, scoped, tag = 'input window, operand 1, single buffered']
    #allocation7 [shape = 's32[1]{0}', space=sflag, size = 0x4, scoped, tag = 'scoped memory for tpu_custom_call.1']
    %9 = vsyncpa [#allocation5], 0
    %10 = vsyncpa [#allocation7], 0
    // Predicated region
    $region2: #{tpu_custom_call.1} parent=1 // pred_check
      _
    $region3: #{tpu_custom_call.1} parent=1 // pred_check_branch
      %12 = sbr.rel (0) target = $region5
    $region4: #{tpu_custom_call.1} parent=1 // pred_region
      %s13 = sadd.s32 0, 0
      %s14 = smul.u32 8, %s13
      %s16 = ssub.s32 256, 256
      %17 = vsyncadd [#allocation5], %s16
      %s18 = smul.addr %s14, 32
      %s19 = scalar_lea.hbm %s0, %s18
      %s21 = sshll.u32 [#allocation4], 4
      %s22 = int_to_ptr.vmem [resolvable:$true] %s21
      %24 = dma.hbm_to_vmem [thread:$0]  %s19, 256, %s22, [#allocation5]
    $region5: #{tpu_custom_call.1} parent=1 // pred_fallthru
      _
    // Predicated region
    $region6: #{tpu_custom_call.1} parent=1 // pred_check
      _
    $region7: #{tpu_custom_call.1} parent=1 // pred_check_branch
      %26 = sbr.rel (0) target = $region9
    $region8: #{tpu_custom_call.1} parent=1 // pred_region
      %s27 = sadd.s32 0, 0
      %s28 = smul.u32 8, %s27
      %s30 = ssub.s32 256, 256
      %31 = vsyncadd [#allocation7], %s30
      %s32 = smul.addr %s28, 32
      %s33 = scalar_lea.hbm %s1, %s32
      %s35 = sshll.u32 [#allocation6], 4
      %s36 = int_to_ptr.vmem [resolvable:$true] %s35
      %38 = dma.hbm_to_vmem [thread:$0]  %s33, 256, %s36, [#allocation7]
    $region9: #{tpu_custom_call.1} parent=1 // pred_fallthru
      _
    // Predicated region
    $region10: #{tpu_custom_call.1} parent=1 // pred_check
      _
    $region11: #{tpu_custom_call.1} parent=1 // pred_check_branch
      %40 = sbr.rel (0) target = $region13
    $region12: #{tpu_custom_call.1} parent=1 // pred_region
      %41 = dma.done [#allocation5], 256
    $region13: #{tpu_custom_call.1} parent=1 // pred_fallthru
      _
    // Predicated region
    $region14: #{tpu_custom_call.1} parent=1 // pred_check
      _
    $region15: #{tpu_custom_call.1} parent=1 // pred_check_branch
      %43 = sbr.rel (0) target = $region17
    $region16: #{tpu_custom_call.1} parent=1 // pred_region
      %44 = dma.done [#allocation7], 256
    $region17: #{tpu_custom_call.1} parent=1 // pred_fallthru
      _
    %s45 = sadd.s32 0, 0
    %s46 = smul.u32 8, %s45
    %s47 = sadd.s32 0, 0
    %s48 = smul.u32 8, %s47
    %p49 = scmp.eq.s32.totalorder 0, 0
    // Predicated region
    $region18: #{tpu_custom_call.1} parent=1 // pred_check
      %p50 = pneg %p49
    $region19: #{tpu_custom_call.1} parent=1 // pred_check_branch
      %52 = sbr.rel (%p50) target = $region21
    $region20: #{tpu_custom_call.1} parent=1 // pred_region
      %vm53 = vcmask 1024
      %54 = vst.msk [vmem:[#allocation2] sm:$0x3] %vm53, 0.0
      %55 = vst.msk [vmem:[#allocation3] sm:$0x3] %vm53, 0.0
    $region21: #{tpu_custom_call.1} parent=1 // pred_fallthru
      _
    %v56 = vld [vmem:[#allocation4] sm:$0xff]
    %v57 = vld [vmem:[#allocation4 + $0x8] sm:$0xff]
    %v58 = vld [vmem:[#allocation6] sm:$0xff]
    %v59 = vld [vmem:[#allocation6 + $0x8] sm:$0xff]
    %v60 = vld [vmem:[#allocation2] sm:$0x3]
    %v61 = vmul.f32 %v56, %v58
    %v62 = vmul.f32 %v57, %v59
    %v65 = vcombine.high %v61, %v61
    %v67 = vunpack.c.l.s4 1983009808
    %v68 = vunpack.c.0.s8 %v67
    %v69 = vlaneseq
    %v70 = vshrl.u32 %v69, 7
    %v71 = vsub.s32 %v68, %v70
    %v72 = vrot.slane %v61, %v71
    %v74 = vunpack.c.l.s4 1983009808
    %v75 = vunpack.c.0.s8 %v74
    %v76 = vlaneseq
    %v77 = vshrl.u32 %v76, 7
    %v78 = vsub.s32 %v75, %v77
    %v79 = vrot.slane %v65, %v78
    %v80 = vcombine.high %v72, %v72
    %v81 = vcombine.high %v79, %v79
    %v82 = vcombine.high %v62, %v62
    %v84 = vunpack.c.l.s4 1983009808
    %v85 = vunpack.c.0.s8 %v84
    %v86 = vlaneseq
    %v87 = vshrl.u32 %v86, 7
    %v88 = vsub.s32 %v85, %v87
    %v89 = vrot.slane %v62, %v88
    %v91 = vunpack.c.l.s4 1983009808
    %v92 = vunpack.c.0.s8 %v91
    %v93 = vlaneseq
    %v94 = vshrl.u32 %v93, 7
    %v95 = vsub.s32 %v92, %v94
    %v96 = vrot.slane %v82, %v95
    %v97 = vcombine.high %v89, %v89
    %v98 = vcombine.high %v96, %v96
    %vm107 = vcmask 1041408
    %v108 = vsel %vm107, %v72, 0.0
    %v109 = vsel %vm107, %v80, 0.0
    %v110 = vadd.f32 %v108, %v109
    %v111 = vsel %vm107, %v79, 0.0
    %v112 = vadd.f32 %v110, %v111
    %v113 = vsel %vm107, %v81, 0.0
    %v114 = vadd.f32 %v112, %v113
    %v115 = vsel %vm107, %v89, 0.0
    %v116 = vadd.f32 %v114, %v115
    %v117 = vsel %vm107, %v97, 0.0
    %v118 = vadd.f32 %v116, %v117
    %v119 = vsel %vm107, %v96, 0.0
    %v120 = vadd.f32 %v118, %v119
    %v121 = vsel %vm107, %v98, 0.0
    %v122 = vadd.f32 %v120, %v121
    %123 = vadd.xlane.f32.xlu0 %v122
    %v124 = vpop.xlane.xlu0 %123
    %v125 = vadd.f32 %v60, %v124
    %vm126 = vcmask 1024
    %127 = vst.msk [vmem:[#allocation2] sm:$0x3] %vm126, %v125
    %v128 = vld [vmem:[#allocation3] sm:$0x3]
    %v129 = vadd.f32 %v56, %v58
    %v130 = vadd.f32 %v57, %v59
    %v133 = vcombine.high %v129, %v129
    %v135 = vunpack.c.l.s4 1983009808
    %v136 = vunpack.c.0.s8 %v135
    %v137 = vlaneseq
    %v138 = vshrl.u32 %v137, 7
    %v139 = vsub.s32 %v136, %v138
    %v140 = vrot.slane %v129, %v139
    %v142 = vunpack.c.l.s4 1983009808
    %v143 = vunpack.c.0.s8 %v142
    %v144 = vlaneseq
    %v145 = vshrl.u32 %v144, 7
    %v146 = vsub.s32 %v143, %v145
    %v147 = vrot.slane %v133, %v146
    %v148 = vcombine.high %v140, %v140
    %v149 = vcombine.high %v147, %v147
    %v150 = vcombine.high %v130, %v130
    %v152 = vunpack.c.l.s4 1983009808
    %v153 = vunpack.c.0.s8 %v152
    %v154 = vlaneseq
    %v155 = vshrl.u32 %v154, 7
    %v156 = vsub.s32 %v153, %v155
    %v157 = vrot.slane %v130, %v156
    %v159 = vunpack.c.l.s4 1983009808
    %v160 = vunpack.c.0.s8 %v159
    %v161 = vlaneseq
    %v162 = vshrl.u32 %v161, 7
    %v163 = vsub.s32 %v160, %v162
    %v164 = vrot.slane %v150, %v163
    %v165 = vcombine.high %v157, %v157
    %v166 = vcombine.high %v164, %v164
    %v175 = vsel %vm107, %v140, 0.0
    %v176 = vsel %vm107, %v148, 0.0
    %v177 = vadd.f32 %v175, %v176
    %v178 = vsel %vm107, %v147, 0.0
    %v179 = vadd.f32 %v177, %v178
    %v180 = vsel %vm107, %v149, 0.0
    %v181 = vadd.f32 %v179, %v180
    %v182 = vsel %vm107, %v157, 0.0
    %v183 = vadd.f32 %v181, %v182
    %v184 = vsel %vm107, %v165, 0.0
    %v185 = vadd.f32 %v183, %v184
    %v186 = vsel %vm107, %v164, 0.0
    %v187 = vadd.f32 %v185, %v186
    %v188 = vsel %vm107, %v166, 0.0
    %v189 = vadd.f32 %v187, %v188
    %190 = vadd.xlane.f32.xlu0 %v189
    %v191 = vpop.xlane.xlu0 %190
    %v192 = vadd.f32 %v128, %v191
    %193 = vst.msk [vmem:[#allocation3] sm:$0x3] %vm126, %v192
    // Predicated region
    $region22: #{tpu_custom_call.1} parent=1 // pred_check
      %p194 = pneg %p49
    $region23: #{tpu_custom_call.1} parent=1 // pred_check_branch
      %196 = sbr.rel (%p194) target = $region25
    $region24: #{tpu_custom_call.1} parent=1 // pred_region
      %v197 = vld [vmem:[#allocation2] sm:$0x3]
      %198 = vst.msk [vmem:[%s2] sm:$0x3] %vm126, %v197
      %v199 = vld [vmem:[#allocation3] sm:$0x3]
      %200 = vst.msk [vmem:[%s3] sm:$0x3] %vm126, %v199
    $region25: #{tpu_custom_call.1} parent=1 // pred_fallthru
      _
    // Predicated region
    $region26: #{tpu_custom_call.1} parent=1 // pred_check
      _
    $region27: #{tpu_custom_call.1} parent=1 // pred_check_branch
      %202 = sbr.rel (0) target = $region29
    $region28: #{tpu_custom_call.1} parent=1 // pred_region
      _
    $region29: #{tpu_custom_call.1} parent=1 // pred_fallthru
      _
    // Predicated region
    $region30: #{tpu_custom_call.1} parent=1 // pred_check
      _
    $region31: #{tpu_custom_call.1} parent=1 // pred_check_branch
      %204 = sbr.rel (0) target = $region33
    $region32: #{tpu_custom_call.1} parent=1 // pred_region
      _
    $region33: #{tpu_custom_call.1} parent=1 // pred_fallthru
      _
    // Predicated region
    $region34: #{tpu_custom_call.1} parent=1 // pred_check
      _
    $region35: #{tpu_custom_call.1} parent=1 // pred_check_branch
      %206 = sbr.rel (0) target = $region37
    $region36: #{tpu_custom_call.1} parent=1 // pred_region
      _
    $region37: #{tpu_custom_call.1} parent=1 // pred_fallthru
      _
    // Predicated region
    $region38: #{tpu_custom_call.1} parent=1 // pred_check
      _
    $region39: #{tpu_custom_call.1} parent=1 // pred_check_branch
      %208 = sbr.rel (0) target = $region41
    $region40: #{tpu_custom_call.1} parent=1 // pred_region
      _
    $region41: #{tpu_custom_call.1} parent=1 // pred_fallthru
      _
    %209 = vsyncpa [#allocation5], 1
    %210 = vsyncpa [#allocation7], 1

</llo_original>
